<compile_context>
chip_gen: v7x
topology: tpu7x:2x2x1
jax: 0.10.0
libtpu: 0.0.40
codegen_flags: <defaults>
</compile_context>

<pallas_src>
import functools

import numpy as np
import jax
import jax.numpy as jnp
from jax import lax
from jax.experimental import pallas as pl
from jax.experimental.pallas import tpu as pltpu


# ----------------------------- Pallas kernels ------------------------------ #

def _matmul_stats_kernel(w_ref, lhs_ref, y_ref, sum_ref, m2_ref, *, inv_cnt):
    """Pass 1: one fused MXU matmul per (image, phase, row-tile) + partial BN stats.

    w_ref   : (1, Cout, Kc)    bf16  per-phase taps, contraction on the minor dim
    lhs_ref : (1, 1, Kc, TR)   bf16  phase-im2col input, output rows on the lane axis
    y_ref   : (1, 1, Cout, TR) f32   pre-BN conv output (lane-dense, no channel pad)
    sum_ref / m2_ref : (1,1,1,Cout,1) f32  per-tile sum / centered sum-of-squares
    """
    y = jnp.dot(w_ref[0], lhs_ref[0, 0], preferred_element_type=jnp.float32)
    y_ref[0, 0] = y
    s = jnp.sum(y, axis=1, keepdims=True)            # (Cout, 1)
    d = y - s * inv_cnt                              # centered (no E[y^2]-E[y]^2 cancel)
    sum_ref[0, 0, 0] = s
    m2_ref[0, 0, 0] = jnp.sum(d * d, axis=1, keepdims=True)


def _bn_elu_kernel(y_ref, scale_ref, shift_ref, o_ref):
    """Pass 2: elementwise folded-BN affine + ELU(alpha=1) on the compact y blocks."""
    z = y_ref[0, 0] * scale_ref[...] + shift_ref[...]          # (Cout, TR)*(Cout, 1)
    o_ref[0, 0] = jnp.where(z > 0, z, jnp.expm1(jnp.minimum(z, 0.0)))


# ------------------------------- Wrapper ----------------------------------- #

def conv_transpose_layer_forward(x_nchw, weight, bias, gamma, beta,
                                 stride, padding, eps=1e-5):
    """x_nchw: [N, Cin, H, W]; weight: [Cin, Cout, K, K] (PyTorch ConvTranspose2d).

    NOTE: `bias` is accepted but not used by the kernels — a per-channel bias cancels
    exactly under training-mode BatchNorm (the batch mean absorbs it).  The reference
    below includes it, so the test verifies the cancellation.
    """
    del bias
    N, Cin, H, W = x_nchw.shape
    _, Cout, K, _ = weight.shape
    s, p = int(stride), int(padding)
    Ho = (H - 1) * s - 2 * p + K
    Wo = (W - 1) * s - 2 * p + K
    assert Ho > 0 and Wo > 0
    # TODO(synk): support Ho % stride != 0 (needs masked partial phases in the stats).
    assert Ho % s == 0 and Wo % s == 0, "output size must be divisible by stride"
    Hoq, Woq = Ho // s, Wo // s
    rows = Hoq * Woq
    ntap = -(-K // s)                       # taps per dim per phase (ceil)
    Kc = ntap * ntap * Cin                  # fused contraction depth
    nphase = s * s

    # Phase geometry: output phase ph uses taps kh = (ph+p)%s + s*kq and reads input
    # row ih = oq + base[ph] - kq with base[ph] = (ph+p)//s (identically for width).
    base = [(ph + p) // s for ph in range(s)]
    pb = max(0, (ntap - 1) - min(base))             # pad before (top/left)
    pa_h = max(0, max(base) + Hoq - H)              # pad after (bottom)
    pa_w = max(0, max(base) + Woq - W)              # pad after (right)

    # --- wrapper-side layout prep (cheap XLA): pad + bf16 cast once, then fold the
    #     (K/s)^2 tap windows of each phase into the contraction dim with the output
    #     rows on the minor (lane) axis.  No dilation zeros, no channel padding. ---
    xb = jnp.pad(x_nchw.astype(jnp.bfloat16),
                 ((0, 0), (0, 0), (pb, pa_h), (pb, pa_w)))      # (N, Cin, Hp, Wp)
    phase_lhs = []
    w_ph = jnp.zeros((nphase, Cout, Kc), jnp.float32)
    for ph in range(s):
        for pw in range(s):
            pi = ph * s + pw
            rh, rw = (ph + p) % s, (pw + p) % s
            taps = []
            for kqh in range(ntap):
                for kqw in range(ntap):
                    sh = base[ph] + pb - kqh
                    sw = base[pw] + pb - kqw
                    taps.append(
                        xb[:, :, sh:sh + Hoq, sw:sw + Woq].reshape(N, Cin, rows))
                    kh, kw = rh + s * kqh, rw + s * kqw
                    if kh < K and kw < K:               # phantom taps keep zero weight
                        t = kqh * ntap + kqw
                        w_ph = w_ph.at[pi, :, t * Cin:(t + 1) * Cin].set(
                            jnp.transpose(weight[:, :, kh, kw], (1, 0)))
            phase_lhs.append(jnp.concatenate(taps, axis=1))     # (N, Kc, rows)
    lhs_all = jnp.stack(phase_lhs, axis=1)                      # (N, s^2, Kc, rows) bf16
    w_ph = w_ph.astype(jnp.bfloat16)

    # Row tiling (keeps per-step VMEM bounded and adds grid steps for large images).
    TR = rows
    if rows > 2048:
        for cand in (4096, 2048, 1024, 512, 256, 128):
            if rows % cand == 0:
                TR = cand
                break
    ntiles = rows // TR

    # VMEM budget computed from the actual double-buffered block sizes (item 8).
    blk1 = Cout * Kc * 2 + Kc * TR * 2 + Cout * TR * 4 + 2 * Cout * 4
    blk2 = 2 * Cout * TR * 4 + 2 * Cout * 4
    vmem_limit = int(min(max(4 * max(blk1, blk2) + (2 << 20), 16 << 20), 48 << 20))
    cparams = pltpu.CompilerParams(
        dimension_semantics=("parallel", "parallel", "parallel"),
        vmem_limit_bytes=vmem_limit)

    grid = (N, nphase, ntiles)
    w_spec = pl.BlockSpec((1, Cout, Kc), lambda n, q, t: (q, 0, 0))
    lhs_spec = pl.BlockSpec((1, 1, Kc, TR), lambda n, q, t: (n, q, 0, t))
    y_spec = pl.BlockSpec((1, 1, Cout, TR), lambda n, q, t: (n, q, 0, t))
    st_spec = pl.BlockSpec((1, 1, 1, Cout, 1), lambda n, q, t: (n, q, t, 0, 0))

    # ---- pass 1: fused conv matmul + per-tile partial BN stats ----
    y_all, sums, m2s = pl.pallas_call(
        functools.partial(_matmul_stats_kernel, inv_cnt=1.0 / TR),
        out_shape=(
            jax.ShapeDtypeStruct((N, nphase, Cout, rows), jnp.float32),
            jax.ShapeDtypeStruct((N, nphase, ntiles, Cout, 1), jnp.float32),
            jax.ShapeDtypeStruct((N, nphase, ntiles, Cout, 1), jnp.float32),
        ),
        grid_spec=pltpu.PrefetchScalarGridSpec(
            num_scalar_prefetch=0, grid=grid,
            in_specs=[w_spec, lhs_spec],
            out_specs=(y_spec, st_spec, st_spec)),
        compiler_params=cparams,
    )(w_ph, lhs_all)

    # ---- glue: combine equal-count per-tile stats (Chan) -> folded BN scale/shift ----
    cnt = jnp.float32(TR)
    total = jnp.float32(N * Ho * Wo)
    sum_f = sums.reshape(-1, Cout)
    m2_f = m2s.reshape(-1, Cout)
    mean = jnp.sum(sum_f, axis=0) / total                        # (Cout,)
    tmean = sum_f / cnt
    m2 = jnp.sum(m2_f, axis=0) + cnt * jnp.sum((tmean - mean) ** 2, axis=0)
    var = m2 / total                                             # biased (BN training)
    scale_v = gamma.astype(jnp.float32) / jnp.sqrt(var + eps)
    shift_v = beta.astype(jnp.float32) - mean * scale_v
    scale2 = scale_v.reshape(Cout, 1)
    shift2 = shift_v.reshape(Cout, 1)

    # ---- pass 2: elementwise folded-BN + ELU, lane-dense (Cout, rows) writes ----
    sc_spec = pl.BlockSpec((Cout, 1), lambda n, q, t: (0, 0))
    out_all = pl.pallas_call(
        _bn_elu_kernel,
        out_shape=jax.ShapeDtypeStruct((N, nphase, Cout, rows), jnp.float32),
        grid_spec=pltpu.PrefetchScalarGridSpec(
            num_scalar_prefetch=0, grid=grid,
            in_specs=[y_spec, sc_spec, sc_spec],
            out_specs=y_spec),
        compiler_params=cparams,
    )(y_all, scale2, shift2)

    # Epilogue: de-interleave the s^2 output phases into NCHW (exact-size tensor).
    out = out_all.reshape(N, s, s, Cout, Hoq, Woq)
    out = jnp.transpose(out, (0, 3, 4, 1, 5, 2)).reshape(N, Cout, Ho, Wo)
    return out


# ------------------------------ Reference ---------------------------------- #

def reference_forward(x_nchw, weight, bias, gamma, beta, stride, padding, eps=1e-5):
    """Independent reference: lax.conv_general_dilated + training-mode BN + ELU."""
    N, Cin, H, W = x_nchw.shape
    _, Cout, K, _ = weight.shape
    pp = K - 1 - padding
    w_oihw = jnp.transpose(weight[:, :, ::-1, ::-1], (1, 0, 2, 3))   # (Cout, Cin, K, K)
    y = lax.conv_general_dilated(
        x_nchw.astype(jnp.float32), w_oihw.astype(jnp.float32),
        window_strides=(1, 1), padding=((pp, pp), (pp, pp)),
        lhs_dilation=(stride, stride),
        dimension_numbers=("NCHW", "OIHW", "NCHW"))
    y = y + bias.reshape(1, Cout, 1, 1)
    mean = jnp.mean(y, axis=(0, 2, 3), keepdims=True)
    var = jnp.var(y, axis=(0, 2, 3), keepdims=True)                  # biased (training)
    z = (y - mean) / jnp.sqrt(var + eps) * gamma.reshape(1, Cout, 1, 1) \
        + beta.reshape(1, Cout, 1, 1)
    return jax.nn.elu(z)


# --------------------------------- Main ------------------------------------ #

if __name__ == "__main__":
    # ConvTranspose_layer(in_channels=4, out_channels=8, kernel_size=4, stride=2, padding=1)
    N, Cin, H, W = 2, 4, 16, 16
    Cout, K, stride, padding = 8, 4, 2, 1

    key = jax.random.PRNGKey(0)
    kx, kw, kb, kg, kbe = jax.random.split(key, 5)

    x = jax.random.normal(kx, (N, Cin, H, W), dtype=jnp.float32)
    # PyTorch ConvTranspose2d weight layout: [in_channels, out_channels, K, K]
    weight = jax.random.normal(kw, (Cin, Cout, K, K), dtype=jnp.float32) * 0.1
    bias = jax.random.normal(kb, (Cout,), dtype=jnp.float32) * 0.1
    gamma = 1.0 + 0.1 * jax.random.normal(kg, (Cout,), dtype=jnp.float32)
    beta = 0.1 * jax.random.normal(kbe, (Cout,), dtype=jnp.float32)

    out = jax.block_until_ready(
        conv_transpose_layer_forward(x, weight, bias, gamma, beta, stride, padding))

    Ho = (H - 1) * stride - 2 * padding + K
    Wo = (W - 1) * stride - 2 * padding + K
    assert out.shape == (N, Cout, Ho, Wo), out.shape

    ref = jax.block_until_ready(
        reference_forward(x, weight, bias, gamma, beta, stride, padding))
    # bf16 MXU operands (f32 accumulation) vs pure-f32 reference -> bf16-level tolerance.
    np.testing.assert_allclose(np.asarray(out), np.asarray(ref), rtol=3e-2, atol=3e-2)

    print("KERNEL_OK")
</pallas_src>

<mosaic_0001>
module attributes {stable_mosaic.version = 11 : i64} {
  func.func @_matmul_stats_kernel(%arg0: i32, %arg1: i32, %arg2: i32, %arg3: memref<1x8x16xbf16, #tpu.memory_space<vmem>>, %arg4: memref<1x1x16x256xbf16, #tpu.memory_space<vmem>>, %arg5: memref<1x1x8x256xf32, #tpu.memory_space<vmem>>, %arg6: memref<1x1x1x8x1xf32, #tpu.memory_space<vmem>>, %arg7: memref<1x1x1x8x1xf32, #tpu.memory_space<vmem>>) attributes {dimension_semantics = [#tpu.dimension_semantics<parallel>, #tpu.dimension_semantics<parallel>, #tpu.dimension_semantics<parallel>], iteration_bounds = array<i64: 2, 4, 1>, scalar_prefetch = 0 : i64, scratch_operands = 0 : i64, tpu.core_type = #tpu.core_type<tc>, window_params = [{transform_indices = @transform_0, window_bounds = array<i64: 1, 8, 16>}, {transform_indices = @transform_1, window_bounds = array<i64: 1, 1, 16, 256>}, {transform_indices = @transform_2, window_bounds = array<i64: 1, 1, 8, 256>}, {transform_indices = @transform_3, window_bounds = array<i64: 1, 1, 1, 8, 1>}, {transform_indices = @transform_4, window_bounds = array<i64: 1, 1, 1, 8, 1>}]} {
    %c0 = arith.constant 0 : index
    %c0_0 = arith.constant 0 : index
    %c0_1 = arith.constant 0 : index
    %0 = vector.load %arg3[%c0, %c0_0, %c0_1] : memref<1x8x16xbf16, #tpu.memory_space<vmem>>, vector<1x8x16xbf16>
    %1 = vector.shape_cast %0 : vector<1x8x16xbf16> to vector<8x16xbf16>
    %c0_2 = arith.constant 0 : index
    %c0_3 = arith.constant 0 : index
    %c0_4 = arith.constant 0 : index
    %c0_5 = arith.constant 0 : index
    %2 = vector.load %arg4[%c0_2, %c0_3, %c0_4, %c0_5] : memref<1x1x16x256xbf16, #tpu.memory_space<vmem>>, vector<1x1x16x256xbf16>
    %3 = vector.shape_cast %2 : vector<1x1x16x256xbf16> to vector<16x256xbf16>
    %cst = arith.constant dense<0.000000e+00> : vector<8x256xf32>
    %4 = tpu.matmul %1, %3, %cst {dimension_numbers = #tpu.dot_dimension_numbers<[1], [0], [0], [1], [0, 0, 1, 1], [], []>} : vector<8x16xbf16>, vector<16x256xbf16>, vector<8x256xf32> -> vector<8x256xf32>
    %c0_6 = arith.constant 0 : index
    %c0_7 = arith.constant 0 : index
    %c0_8 = arith.constant 0 : index
    %c0_9 = arith.constant 0 : index
    %5 = vector.load %arg5[%c0_6, %c0_7, %c0_8, %c0_9] : memref<1x1x8x256xf32, #tpu.memory_space<vmem>>, vector<1x1x8x256xf32>
    %6 = vector.shape_cast %5 : vector<1x1x8x256xf32> to vector<8x256xf32>
    %7 = vector.shape_cast %4 : vector<8x256xf32> to vector<1x1x8x256xf32>
    tpu.vector_store %arg5[%c0_6, %c0_7, %c0_8, %c0_9], %7 {strides = array<i32>} : memref<1x1x8x256xf32, #tpu.memory_space<vmem>>, vector<1x1x8x256xf32>,
    %cst_10 = arith.constant dense<0.000000e+00> : vector<8xf32>
    %8 = vector.multi_reduction <add>, %4, %cst_10 [1] : vector<8x256xf32> to vector<8xf32>
    %9 = vector.shape_cast %8 : vector<8xf32> to vector<8x1xf32>
    %cst_11 = arith.constant 3.906250e-03 : f32
    %10 = vector.broadcast %cst_11 : f32 to vector<8x1xf32>
    %11 = arith.mulf %9, %10 : vector<8x1xf32>
    %12 = vector.broadcast %11 : vector<8x1xf32> to vector<8x256xf32>
    %13 = arith.subf %4, %12 : vector<8x256xf32>
    %c0_12 = arith.constant 0 : index
    %c0_13 = arith.constant 0 : index
    %c0_14 = arith.constant 0 : index
    %c0_15 = arith.constant 0 : index
    %c0_16 = arith.constant 0 : index
    %14 = vector.load %arg6[%c0_12, %c0_13, %c0_14, %c0_15, %c0_16] : memref<1x1x1x8x1xf32, #tpu.memory_space<vmem>>, vector<1x1x1x8x1xf32>
    %15 = vector.shape_cast %14 : vector<1x1x1x8x1xf32> to vector<8x1xf32>
    %16 = vector.shape_cast %9 : vector<8x1xf32> to vector<1x1x1x8x1xf32>
    tpu.vector_store %arg6[%c0_12, %c0_13, %c0_14, %c0_15, %c0_16], %16 {strides = array<i32>} : memref<1x1x1x8x1xf32, #tpu.memory_space<vmem>>, vector<1x1x1x8x1xf32>,
    %17 = arith.mulf %13, %13 : vector<8x256xf32>
    %cst_17 = arith.constant dense<0.000000e+00> : vector<8xf32>
    %18 = vector.multi_reduction <add>, %17, %cst_17 [1] : vector<8x256xf32> to vector<8xf32>
    %19 = vector.shape_cast %18 : vector<8xf32> to vector<8x1xf32>
    %c0_18 = arith.constant 0 : index
    %c0_19 = arith.constant 0 : index
    %c0_20 = arith.constant 0 : index
    %c0_21 = arith.constant 0 : index
    %c0_22 = arith.constant 0 : index
    %20 = vector.load %arg7[%c0_18, %c0_19, %c0_20, %c0_21, %c0_22] : memref<1x1x1x8x1xf32, #tpu.memory_space<vmem>>, vector<1x1x1x8x1xf32>
    %21 = vector.shape_cast %20 : vector<1x1x1x8x1xf32> to vector<8x1xf32>
    %22 = vector.shape_cast %19 : vector<8x1xf32> to vector<1x1x1x8x1xf32>
    tpu.vector_store %arg7[%c0_18, %c0_19, %c0_20, %c0_21, %c0_22], %22 {strides = array<i32>} : memref<1x1x1x8x1xf32, #tpu.memory_space<vmem>>, vector<1x1x1x8x1xf32>,
    return
  }
  func.func @transform_0(%arg0: i32, %arg1: i32, %arg2: i32) -> (i32, i32, i32) {
    %c0_i32 = arith.constant 0 : i32
    %c0_i32_0 = arith.constant 0 : i32
    %c0_i32_1 = arith.constant 0 : i32
    return %arg1, %c0_i32, %c0_i32_0 : i32, i32, i32
  }
  func.func @transform_1(%arg0: i32, %arg1: i32, %arg2: i32) -> (i32, i32, i32, i32) {
    %c0_i32 = arith.constant 0 : i32
    %c0_i32_0 = arith.constant 0 : i32
    return %arg0, %arg1, %c0_i32, %arg2 : i32, i32, i32, i32
  }
  func.func @transform_2(%arg0: i32, %arg1: i32, %arg2: i32) -> (i32, i32, i32, i32) {
    %c0_i32 = arith.constant 0 : i32
    %c0_i32_0 = arith.constant 0 : i32
    return %arg0, %arg1, %c0_i32, %arg2 : i32, i32, i32, i32
  }
  func.func @transform_3(%arg0: i32, %arg1: i32, %arg2: i32) -> (i32, i32, i32, i32, i32) {
    %c0_i32 = arith.constant 0 : i32
    %c0_i32_0 = arith.constant 0 : i32
    %c0_i32_1 = arith.constant 0 : i32
    return %arg0, %arg1, %arg2, %c0_i32, %c0_i32_0 : i32, i32, i32, i32, i32
  }
  func.func @transform_4(%arg0: i32, %arg1: i32, %arg2: i32) -> (i32, i32, i32, i32, i32) {
    %c0_i32 = arith.constant 0 : i32
    %c0_i32_0 = arith.constant 0 : i32
    %c0_i32_1 = arith.constant 0 : i32
    return %arg0, %arg1, %arg2, %c0_i32, %c0_i32_0 : i32, i32, i32, i32, i32
  }
}

</mosaic_0001>

<llo_original>
// kernel: tpu_custom_call.1
$region0: #{tpu_custom_call.1}
  #allocation0 [shape = 'u32[]', space=smem, size = 0x4, offset = 0x4, fixed_abs, tag = 'smem constant byte address 0x4 - core index']
  #allocation1 [shape = 'u32[144,128]{1,0:T(1,128)}', space=vmem, size = 0x12000, scoped, tag = 'internal scratch']
  %s0 = inlined_call_operand.hbm [shape: bf16[4,8,16], index: 0, kind: input, shape index: {}]
  %s1 = inlined_call_operand.hbm [shape: bf16[2,4,16,256], index: 1, kind: input, shape index: {}]
  %s2 = inlined_call_operand.hbm [shape: f32[2,4,8,256], index: 2, kind: output, shape index: {0}]
  %s3 = inlined_call_operand.vmem [shape: f32[2,4,1,8,1], index: 3, kind: output, shape index: {1}]
  %s4 = inlined_call_operand.vmem [shape: f32[2,4,1,8,1], index: 4, kind: output, shape index: {2}]
  %5 = xla_tuple %s2, %s3, %s4
  %s6 = sld [smem:[#allocation0]]
  $region65: #{tpu_custom_call.1} parent=0
    _
  %s8 = ssub.s32 1, %s6
  %s9 = scalar_select 0, %s8, %s6
  $region1: #{tpu_custom_call.1} parent=0
    #allocation2 [shape = 'u8[4096]{0}', space=vmem, size = 0x1000, scoped, tag = 'input window, operand 0']
    #allocation3 [shape = 's32[2]{0}', space=sflag, size = 0x8, scoped, tag = 'scoped memory for tpu_custom_call.1']
    #allocation4 [shape = 's32[2]{0}', space=sflag, size = 0x8, scoped, tag = 'scoped memory for tpu_custom_call.1']
    #allocation5 [shape = 'u8[16384]{0}', space=vmem, size = 0x4000, scoped, tag = 'input window, operand 1']
    #allocation6 [shape = 's32[2]{0}', space=sflag, size = 0x8, scoped, tag = 'scoped memory for tpu_custom_call.1']
    #allocation7 [shape = 'u8[16384]{0}', space=vmem, size = 0x4000, scoped, tag = 'output window, operand 0']
    %10 = vsyncpa [#allocation3], 0
    %s11 = scalar_lea.sflag [#allocation3], 1
    %12 = vsyncpa %s11, 0
    %13 = vsyncpa [#allocation6], 0
    %s14 = scalar_lea.sflag [#allocation6], 1
    %15 = vsyncpa %s14, 0
    %16 = vsyncpa [#allocation4], 0
    %s17 = scalar_lea.sflag [#allocation4], 1
    %18 = vsyncpa %s17, 0
    loop: start=0, step=1, limit=10
    $region2: #{tpu_custom_call.1} parent=1 // loop_pre_header
      _
    $region3: #{tpu_custom_call.1} parent=1 // loop_header
      %s20 = sphi 0, %s24
      %p21 = scmp.ge.s32.totalorder %s20, 10
      %s27 = sphi 0, %s46
      %s28 = sphi 0, %s42
      %s29 = sphi 0, %s38
      %s30 = sphi 0, %s27
      %s31 = sphi 0, %s28
      %s32 = sphi 0, %s29
      %s33 = sphi 0, %s30
      %s34 = sphi 0, %s31
      %s35 = sphi 0, %s32
      %s49 = sphi 0, %s51
      %s52 = sphi 0, %s49
      %s53 = sphi 0, %s52
      %s69 = sphi 0, %s53
      %s79 = sphi 0, %s81
      %s82 = sphi 0, %s79
      %s83 = sphi 0, %s82
      %s99 = sphi 0, %s83
      %s109 = sphi 0, %s111
      %s112 = sphi 0, %s109
      %s113 = sphi 0, %s112
      %s129 = sphi 0, %s113
      %s139 = sphi 0, %s141
      %s142 = sphi 0, %s139
      %s143 = sphi 0, %s142
      %s159 = sphi 0, %s143
      %s169 = sphi 0, %s171
      %s172 = sphi 0, %s169
      %s173 = sphi 0, %s172
      %s189 = sphi 0, %s173
    $region4: #{tpu_custom_call.1} parent=1 // loop_header_branch
      %23 = sbr.rel (%p21) target = $region8
    $region5: #{tpu_custom_call.1} parent=1 // loop_body
      %s25 = ssub.s32 %s20, 1
      %s26 = ssub.s32 %s20, 2
      %s36 = sadd.s32 1, %s29
      %p37 = scmp.ge.s32.totalorder %s36, 1
      %s38 = scalar_select %p37, 0, %s36
      %s39 = sadd.s32 1, %s28
      %s40 = scalar_select %p37, %s39, %s28
      %p41 = scmp.ge.s32.totalorder %s40, 4
      %s42 = scalar_select %p41, 0, %s40
      %s43 = sadd.s32 1, %s27
      %s44 = scalar_select %p41, %s43, %s27
      %p45 = scmp.ge.s32.totalorder %s44, 2
      %s46 = scalar_select %p45, 0, %s44
      %s47 = ssub.s32 %s28, %s42
      %p48 = scmp.eq.s32.totalorder %s47, 0
      %s50 = sadd.s32 %s49, 1
      %s51 = scalar_select %p48, %s49, %s50
      %p54 = pneg %p48
      %p55 = scmp.eq.s32.totalorder %s20, 7
      %p56 = por %p54, %p55
      %p57 = scmp.ne.s32.totalorder %s49, %s52
      %p58 = scmp.eq.s32.totalorder %s20, 0
      %p59 = por %p57, %p58
      %p60 = scmp.ne.s32.totalorder %s49, %s52
      %p61 = scmp.eq.s32.totalorder %s25, 7
      %p62 = por %p60, %p61
      %p63 = scmp.ne.s32.totalorder %s52, %s53
      %p64 = scmp.eq.s32.totalorder %s25, 0
      %p65 = por %p63, %p64
      %p66 = scmp.ne.s32.totalorder %s52, %s53
      %p67 = scmp.eq.s32.totalorder %s26, 7
      %p68 = por %p66, %p67
      %p70 = scmp.ne.s32.totalorder %s53, %s69
      %p71 = scmp.eq.s32.totalorder %s26, 0
      %p72 = por %p70, %p71
      %s73 = ssub.s32 %s27, %s46
      %s74 = ssub.s32 %s28, %s42
      %s75 = sor.u32 %s73, %s74
      %s76 = ssub.s32 %s29, %s38
      %s77 = sor.u32 %s75, %s76
      %p78 = scmp.eq.s32.totalorder %s77, 0
      %s80 = sadd.s32 %s79, 1
      %s81 = scalar_select %p78, %s79, %s80
      %p84 = pneg %p78
      %p85 = scmp.eq.s32.totalorder %s20, 7
      %p86 = por %p84, %p85
      %p87 = scmp.ne.s32.totalorder %s79, %s82
      %p88 = scmp.eq.s32.totalorder %s20, 0
      %p89 = por %p87, %p88
      %p90 = scmp.ne.s32.totalorder %s79, %s82
      %p91 = scmp.eq.s32.totalorder %s25, 7
      %p92 = por %p90, %p91
      %p93 = scmp.ne.s32.totalorder %s82, %s83
      %p94 = scmp.eq.s32.totalorder %s25, 0
      %p95 = por %p93, %p94
      %p96 = scmp.ne.s32.totalorder %s82, %s83
      %p97 = scmp.eq.s32.totalorder %s26, 7
      %p98 = por %p96, %p97
      %p100 = scmp.ne.s32.totalorder %s83, %s99
      %p101 = scmp.eq.s32.totalorder %s26, 0
      %p102 = por %p100, %p101
      %s103 = ssub.s32 %s27, %s46
      %s104 = ssub.s32 %s28, %s42
      %s105 = sor.u32 %s103, %s104
      %s106 = ssub.s32 %s29, %s38
      %s107 = sor.u32 %s105, %s106
      %p108 = scmp.eq.s32.totalorder %s107, 0
      %s110 = sadd.s32 %s109, 1
      %s111 = scalar_select %p108, %s109, %s110
      %p114 = pneg %p108
      %p115 = scmp.eq.s32.totalorder %s20, 7
      %p116 = por %p114, %p115
      %p117 = scmp.ne.s32.totalorder %s109, %s112
      %p118 = scmp.eq.s32.totalorder %s20, 0
      %p119 = por %p117, %p118
      %p120 = scmp.ne.s32.totalorder %s109, %s112
      %p121 = scmp.eq.s32.totalorder %s25, 7
      %p122 = por %p120, %p121
      %p123 = scmp.ne.s32.totalorder %s112, %s113
      %p124 = scmp.eq.s32.totalorder %s25, 0
      %p125 = por %p123, %p124
      %p126 = scmp.ne.s32.totalorder %s112, %s113
      %p127 = scmp.eq.s32.totalorder %s26, 7
      %p128 = por %p126, %p127
      %p130 = scmp.ne.s32.totalorder %s113, %s129
      %p131 = scmp.eq.s32.totalorder %s26, 0
      %p132 = por %p130, %p131
      %s133 = ssub.s32 %s27, %s46
      %s134 = ssub.s32 %s28, %s42
      %s135 = sor.u32 %s133, %s134
      %s136 = ssub.s32 %s29, %s38
      %s137 = sor.u32 %s135, %s136
      %p138 = scmp.eq.s32.totalorder %s137, 0
      %s140 = sadd.s32 %s139, 1
      %s141 = scalar_select %p138, %s139, %s140
      %p144 = pneg %p138
      %p145 = scmp.eq.s32.totalorder %s20, 7
      %p146 = por %p144, %p145
      %p147 = scmp.ne.s32.totalorder %s139, %s142
      %p148 = scmp.eq.s32.totalorder %s20, 0
      %p149 = por %p147, %p148
      %p150 = scmp.ne.s32.totalorder %s139, %s142
      %p151 = scmp.eq.s32.totalorder %s25, 7
      %p152 = por %p150, %p151
      %p153 = scmp.ne.s32.totalorder %s142, %s143
      %p154 = scmp.eq.s32.totalorder %s25, 0
      %p155 = por %p153, %p154
      %p156 = scmp.ne.s32.totalorder %s142, %s143
      %p157 = scmp.eq.s32.totalorder %s26, 7
      %p158 = por %p156, %p157
      %p160 = scmp.ne.s32.totalorder %s143, %s159
      %p161 = scmp.eq.s32.totalorder %s26, 0
      %p162 = por %p160, %p161
      %s163 = ssub.s32 %s27, %s46
      %s164 = ssub.s32 %s28, %s42
      %s165 = sor.u32 %s163, %s164
      %s166 = ssub.s32 %s29, %s38
      %s167 = sor.u32 %s165, %s166
      %p168 = scmp.eq.s32.totalorder %s167, 0
      %s170 = sadd.s32 %s169, 1
      %s171 = scalar_select %p168, %s169, %s170
      %p174 = pneg %p168
      %p175 = scmp.eq.s32.totalorder %s20, 7
      %p176 = por %p174, %p175
      %p177 = scmp.ne.s32.totalorder %s169, %s172
      %p178 = scmp.eq.s32.totalorder %s20, 0
      %p179 = por %p177, %p178
      %p180 = scmp.ne.s32.totalorder %s169, %s172
      %p181 = scmp.eq.s32.totalorder %s25, 7
      %p182 = por %p180, %p181
      %p183 = scmp.ne.s32.totalorder %s172, %s173
      %p184 = scmp.eq.s32.totalorder %s25, 0
      %p185 = por %p183, %p184
      %p186 = scmp.ne.s32.totalorder %s172, %s173
      %p187 = scmp.eq.s32.totalorder %s26, 7
      %p188 = por %p186, %p187
      %p190 = scmp.ne.s32.totalorder %s173, %s189
      %p191 = scmp.eq.s32.totalorder %s26, 0
      %p192 = por %p190, %p191
      %p193 = scmp.le.s32.totalorder 1, %s20
      %p194 = scmp.lt.s32.totalorder %s20, 9
      %p195 = pnand %p193, %p194
      %p196 = pneg %p195
      // Predicated region
      $region9: #{tpu_custom_call.1} parent=5 // pred_check
        _
      $region10: #{tpu_custom_call.1} parent=5 // pred_check_branch
        %198 = sbr.rel (%p195) target = $region12
      $region11: #{tpu_custom_call.1} parent=5 // pred_region
        %s199 = ssub.s32 %s20, 1
      $region12: #{tpu_custom_call.1} parent=5 // pred_fallthru
        _
      %p200 = scmp.lt.s32.totalorder %s20, 8
      // Predicated region
      $region13: #{tpu_custom_call.1} parent=5 // pred_check
        %p201 = pneg %p200
      $region14: #{tpu_custom_call.1} parent=5 // pred_check_branch
        %203 = sbr.rel (%p201) target = $region16
      $region15: #{tpu_custom_call.1} parent=5 // pred_region
        // Predicated region
        $region17: #{tpu_custom_call.1} parent=15 // pred_check
          %p204 = pneg %p59
        $region18: #{tpu_custom_call.1} parent=15 // pred_check_branch
          %206 = sbr.rel (%p204) target = $region20
        $region19: #{tpu_custom_call.1} parent=15 // pred_region
          %s207 = sand.u32 %s49, 1
          %s208 = scalar_lea.sflag [#allocation3], %s207
          %s209 = sand.u32 %s49, 1
          %s210 = smul.addr %s209, 4
          %s211 = scalar_lea.vmem [#allocation2], %s210
          %s213 = ssub.s32 64, 64
          %214 = vsyncadd %s208, %s213
          %s215 = smul.addr %s28, 64
          %s216 = scalar_lea.hbm %s0, %s215
          %s218 = sshll.u32 %s211, 4
          %s219 = int_to_ptr.vmem [resolvable:$true] %s218
          %221 = dma.hbm_to_vmem [thread:$0]  %s216, 64, %s219, %s208
        $region20: #{tpu_custom_call.1} parent=15 // pred_fallthru
          _
        // Predicated region
        $region21: #{tpu_custom_call.1} parent=15 // pred_check
          %p222 = pneg %p89
        $region22: #{tpu_custom_call.1} parent=15 // pred_check_branch
          %224 = sbr.rel (%p222) target = $region24
        $region23: #{tpu_custom_call.1} parent=15 // pred_region
          %s225 = sand.u32 %s79, 1
          %s226 = scalar_lea.sflag [#allocation6], %s225
          %s227 = sand.u32 %s79, 1
          %s228 = smul.addr %s227, 16
          %s229 = scalar_lea.vmem [#allocation5], %s228
          %s230 = smul.u32 2, %s29
          %s232 = ssub.s32 256, 256
          %233 = vsyncadd %s226, %s232
          %s234 = smul.addr %s28, 4
          %s235 = sadd.s32 %s230, %s234
          %s236 = smul.addr %s27, 16
          %s237 = sadd.s32 %s235, %s236
          %s238 = smul.addr %s237, 64
          %s239 = scalar_lea.hbm %s1, %s238
          %s240 = sshll.u32 %s229, 4
          %s241 = int_to_ptr.vmem [resolvable:$true] %s240
          %246 = dma.hbm_to_vmem [thread:$0]  %s239, 256, %s241, %s226, 128, 128, 8
        $region24: #{tpu_custom_call.1} parent=15 // pred_fallthru
          _
      $region16: #{tpu_custom_call.1} parent=5 // pred_fallthru
        _
      %p247 = scmp.le.s32.totalorder 1, %s20
      %p248 = scmp.lt.s32.totalorder %s20, 9
      %p249 = pnand %p247, %p248
      %p250 = pneg %p249
      // Predicated region
      $region25: #{tpu_custom_call.1} parent=5 // pred_check
        _
      $region26: #{tpu_custom_call.1} parent=5 // pred_check_branch
        %252 = sbr.rel (%p249) target = $region28
      $region27: #{tpu_custom_call.1} parent=5 // pred_region
        %s253 = ssub.s32 %s20, 1
        %s254 = sand.u32 %s52, 1
        %s255 = scalar_lea.sflag [#allocation3], %s254
        %s256 = sand.u32 %s52, 1
        %s257 = smul.addr %s256, 4
        %s258 = scalar_lea.vmem [#allocation2], %s257
        // Predicated region
        $region29: #{tpu_custom_call.1} parent=27 // pred_check
          %p259 = pneg %p65
        $region30: #{tpu_custom_call.1} parent=27 // pred_check_branch
          %261 = sbr.rel (%p259) target = $region32
        $region31: #{tpu_custom_call.1} parent=27 // pred_region
          %262 = dma.done %s255, 64
        $region32: #{tpu_custom_call.1} parent=27 // pred_fallthru
          _
        %s263 = sand.u32 %s82, 1
        %s264 = scalar_lea.sflag [#allocation6], %s263
        %s265 = sand.u32 %s82, 1
        %s266 = smul.addr %s265, 16
        %s267 = scalar_lea.vmem [#allocation5], %s266
        // Predicated region
        $region33: #{tpu_custom_call.1} parent=27 // pred_check
          %p268 = pneg %p95
        $region34: #{tpu_custom_call.1} parent=27 // pred_check_branch
          %270 = sbr.rel (%p268) target = $region36
        $region35: #{tpu_custom_call.1} parent=27 // pred_region
          %271 = dma.done %s264, 256
        $region36: #{tpu_custom_call.1} parent=27 // pred_fallthru
          _
        %s272 = sand.u32 %s52, 1
        %s273 = scalar_lea.sflag [#allocation3], %s272
        %s274 = sand.u32 %s52, 1
        %s275 = smul.addr %s274, 4
        %s276 = scalar_lea.vmem [#allocation2], %s275
        %p277 = pneg %p65
        %p278 = pneg %p62
        %s279 = sand.u32 %s82, 1
        %s280 = scalar_lea.sflag [#allocation6], %s279
        %s281 = sand.u32 %s82, 1
        %s282 = smul.addr %s281, 16
        %s283 = scalar_lea.vmem [#allocation5], %s282
        %p284 = pneg %p95
        %p285 = pneg %p92
        %p286 = pneg %p125
        %p287 = pneg %p122
        %s288 = sand.u32 %s112, 1
        %s289 = scalar_lea.sflag [#allocation4], %s288
        %s290 = sand.u32 %s112, 1
        %s291 = smul.addr %s290, 16
        %s292 = scalar_lea.vmem [#allocation7], %s291
        %p293 = pneg %p155
        %p294 = pneg %p152
        %p295 = scmp.lt.s32.totalorder %s30, 1
        %s296 = scalar_select %p295, %s30, 1
        %p297 = scmp.lt.s32.totalorder %s31, 3
        %s298 = scalar_select %p297, %s31, 3
        %p299 = scmp.lt.s32.totalorder %s32, 0
        %s300 = scalar_select %p299, %s32, 0
        %s301 = sadd.s32 %s300, %s298
        %s302 = smul.addr %s296, 4
        %s303 = sadd.s32 %s301, %s302
        %s304 = smul.addr %s303, 8
        %s305 = scalar_lea.vmem %s3, %s304
        %p306 = pneg %p185
        %p307 = pneg %p182
        %p308 = scmp.lt.s32.totalorder %s30, 1
        %s309 = scalar_select %p308, %s30, 1
        %p310 = scmp.lt.s32.totalorder %s31, 3
        %s311 = scalar_select %p310, %s31, 3
        %p312 = scmp.lt.s32.totalorder %s32, 0
        %s313 = scalar_select %p312, %s32, 0
        %s314 = sadd.s32 %s313, %s311
        %s315 = smul.addr %s309, 4
        %s316 = sadd.s32 %s314, %s315
        %s317 = smul.addr %s316, 8
        %s318 = scalar_lea.vmem %s4, %s317
        %s319 = smul.u32 2, %s32
        %s320 = smul.u32 2, %s32
        %p321 = scmp.lt.s32.totalorder %s30, 1
        %s322 = scalar_select %p321, %s30, 1
        %p323 = scmp.lt.s32.totalorder %s31, 3
        %s324 = scalar_select %p323, %s31, 3
        %p325 = scmp.lt.s32.totalorder %s32, 0
        %s326 = scalar_select %p325, %s32, 0
        %s327 = sadd.s32 %s326, %s324
        %s328 = smul.addr %s322, 4
        %s329 = sadd.s32 %s327, %s328
        %s330 = smul.addr %s329, 8
        %s331 = scalar_lea.vmem %s3, %s330
        %p332 = scmp.lt.s32.totalorder %s30, 1
        %s333 = scalar_select %p332, %s30, 1
        %p334 = scmp.lt.s32.totalorder %s31, 3
        %s335 = scalar_select %p334, %s31, 3
        %p336 = scmp.lt.s32.totalorder %s32, 0
        %s337 = scalar_select %p336, %s32, 0
        %s338 = sadd.s32 %s337, %s335
        %s339 = smul.addr %s333, 4
        %s340 = sadd.s32 %s338, %s339
        %s341 = smul.addr %s340, 8
        %s342 = scalar_lea.vmem %s4, %s341
        %v344 = vld [vmem:[%s258] sm:$0xf]
        %v345 = vld [vmem:[%s267] sm:$0xff]
        %v346 = vld [vmem:[%s267 + $0x8] sm:$0xff]
        %v349 = vunpack.c.l.b16 %v345
        %v350 = vunpack.c.h.b16 %v345
        %v351 = vunpack.c.l.b16 %v346
        %v352 = vunpack.c.h.b16 %v346
        %v353 = vpack.c.b16 %v351, %v349
        %v354 = vpack.c.b16 %v352, %v350
        %vm357 = vcmask 130048
        %v359 = vsel %vm357, %v344, 0
        %361 = vmatprep.subr.bf16.mxu0 %v354
        %362 = vmatpush1.bf16.msra.mxu0 %v353
        %363 = vmatprep.subr.bf16.mxu0 0
        %364 = vmatpush1.bf16.msra.mxu0 0
        %365 = vmatprep.subr.bf16.mxu0 0
        %366 = vmatpush1.bf16.msra.mxu0 0
        %367 = vmatprep.subr.bf16.mxu0 0
        %368 = vmatpush1.bf16.msra.mxu0 0
        %369 = vmatprep.subr.bf16.mxu0 0
        %370 = vmatpush1.bf16.msra.mxu0 0
        %371 = vmatprep.subr.bf16.mxu0 0
        %372 = vmatpush1.bf16.msra.mxu0 0
        %373 = vmatprep.subr.bf16.mxu0 0
        %374 = vmatpush1.bf16.msra.mxu0 0
        %375 = vmatprep.subr.bf16.mxu0 0
        %376 = vmatpush1.bf16.msra.mxu0 0
        %377 = vmatprep.subr.bf16.mxu0 0
        %378 = vmatpush1.bf16.msra.mxu0 0
        %379 = vmatprep.subr.bf16.mxu0 0
        %380 = vmatpush1.bf16.msra.mxu0 0
        %381 = vmatprep.subr.bf16.mxu0 0
        %382 = vmatpush1.bf16.msra.mxu0 0
        %383 = vmatprep.subr.bf16.mxu0 0
        %384 = vmatpush1.bf16.msra.mxu0 0
        %385 = vmatprep.subr.bf16.mxu0 0
        %386 = vmatpush1.bf16.msra.mxu0 0
        %387 = vmatprep.subr.bf16.mxu0 0
        %388 = vmatpush1.bf16.msra.mxu0 0
        %389 = vmatprep.subr.bf16.mxu0 0
        %390 = vmatpush1.bf16.msra.mxu0 0
        %391 = vmatprep.subr.bf16.mxu0 0
        %392 = vmatpush1.bf16.msra.mxu0 0
        %393 = vmatprep.mubr.bf16.mxu0 0
        %394 = vmatmul.mubr.bf16.gmra.mrb[0].mxu0 %v359
        %v395 = vpop.f32.mrb[0].mxu0
        %v396 = vadd.f32 0.0, %v395
        %v397 = vpop.f32.mrb[0].mxu0
        %v398 = vadd.f32 0.0, %v397
        %v399 = vpop.f32.mrb[0].mxu0
        %v400 = vpop.f32.mrb[0].mxu0
        %401 = vdwg.mxu0
        %402 = vst [vmem:[%s292] sm:$0xff] %v396
        %403 = vst [vmem:[%s292 + $0x8] sm:$0xff] %v398
        %v404 = vadd.f32 %v396, %v398
        %405 = vadd.xlane.f32.xlu0 %v404
        %v406 = vpop.xlane.xlu0 %405
        %v407 = vmul.f32 %v406, 0.00390625
        %v408 = vsub.f32 %v396, %v407
        %v409 = vsub.f32 %v398, %v407
        %vm410 = vcmask 7168
        %411 = vst.msk [vmem:[%s331] sm:$0xff] %vm410, %v406
        %v412 = vmul.f32 %v408, %v408
        %v413 = vmul.f32 %v409, %v409
        %v414 = vadd.f32 %v412, %v413
        %415 = vadd.xlane.f32.xlu0 %v414
        %v416 = vpop.xlane.xlu0 %415
        %417 = vst.msk [vmem:[%s342] sm:$0xff] %vm410, %v416
        %s418 = sand.u32 %s112, 1
        %s419 = scalar_lea.sflag [#allocation4], %s418
        %s420 = sand.u32 %s112, 1
        %s421 = smul.addr %s420, 16
        %s422 = scalar_lea.vmem [#allocation7], %s421
        %p423 = scmp.lt.s32.totalorder %s30, 1
        %s424 = scalar_select %p423, %s30, 1
        %p425 = scmp.lt.s32.totalorder %s31, 3
        %s426 = scalar_select %p425, %s31, 3
        %p427 = scmp.lt.s32.totalorder %s32, 0
        %s428 = scalar_select %p427, %s32, 0
        %s429 = sadd.s32 %s428, %s426
        %s430 = smul.addr %s424, 4
        %s431 = sadd.s32 %s429, %s430
        %s432 = smul.addr %s431, 8
        %s433 = scalar_lea.vmem %s3, %s432
        %p434 = scmp.lt.s32.totalorder %s30, 1
        %s435 = scalar_select %p434, %s30, 1
        %p436 = scmp.lt.s32.totalorder %s31, 3
        %s437 = scalar_select %p436, %s31, 3
        %p438 = scmp.lt.s32.totalorder %s32, 0
        %s439 = scalar_select %p438, %s32, 0
        %s440 = sadd.s32 %s439, %s437
        %s441 = smul.addr %s435, 4
        %s442 = sadd.s32 %s440, %s441
        %s443 = smul.addr %s442, 8
        %s444 = scalar_lea.vmem %s4, %s443
        // Predicated region
        $region37: #{tpu_custom_call.1} parent=27 // pred_check
          %p445 = pneg %p122
        $region38: #{tpu_custom_call.1} parent=27 // pred_check_branch
          %447 = sbr.rel (%p445) target = $region40
        $region39: #{tpu_custom_call.1} parent=27 // pred_region
          %s448 = smul.u32 2, %s32
          %s450 = ssub.s32 256, 256
          %451 = vsyncadd %s419, %s450
          %s452 = smul.addr %s31, 2
          %s453 = sadd.s32 %s448, %s452
          %s454 = smul.addr %s30, 8
          %s455 = sadd.s32 %s453, %s454
          %s456 = smul.addr %s455, 128
          %s457 = scalar_lea.hbm %s2, %s456
          %s459 = sshll.u32 %s422, 4
          %s460 = int_to_ptr.vmem [resolvable:$true] %s459
          %462 = dma.vmem_to_hbm [thread:$0]  %s460, 256, %s457, %s419
        $region40: #{tpu_custom_call.1} parent=27 // pred_fallthru
          _
        // Predicated region
        $region41: #{tpu_custom_call.1} parent=27 // pred_check
          %p463 = pneg %p152
        $region42: #{tpu_custom_call.1} parent=27 // pred_check_branch
          %465 = sbr.rel (%p463) target = $region44
        $region43: #{tpu_custom_call.1} parent=27 // pred_region
          _
        $region44: #{tpu_custom_call.1} parent=27 // pred_fallthru
          _
        // Predicated region
        $region45: #{tpu_custom_call.1} parent=27 // pred_check
          %p466 = pneg %p182
        $region46: #{tpu_custom_call.1} parent=27 // pred_check_branch
          %468 = sbr.rel (%p466) target = $region48
        $region47: #{tpu_custom_call.1} parent=27 // pred_region
          _
        $region48: #{tpu_custom_call.1} parent=27 // pred_fallthru
          _
      $region28: #{tpu_custom_call.1} parent=5 // pred_fallthru
        _
      %p469 = scmp.le.s32.totalorder 2, %s20
      // Predicated region
      $region49: #{tpu_custom_call.1} parent=5 // pred_check
        %p470 = pneg %p469
      $region50: #{tpu_custom_call.1} parent=5 // pred_check_branch
        %472 = sbr.rel (%p470) target = $region52
      $region51: #{tpu_custom_call.1} parent=5 // pred_region
        %s473 = ssub.s32 %s20, 2
        // Predicated region
        $region53: #{tpu_custom_call.1} parent=51 // pred_check
          %p474 = pneg %p128
        $region54: #{tpu_custom_call.1} parent=51 // pred_check_branch
          %476 = sbr.rel (%p474) target = $region56
        $region55: #{tpu_custom_call.1} parent=51 // pred_region
          %s477 = sand.u32 %s113, 1
          %s478 = scalar_lea.sflag [#allocation4], %s477
          %s479 = sand.u32 %s113, 1
          %s480 = smul.addr %s479, 16
          %s481 = scalar_lea.vmem [#allocation7], %s480
          %482 = dma.done %s478, 256
        $region56: #{tpu_custom_call.1} parent=51 // pred_fallthru
          _
        // Predicated region
        $region57: #{tpu_custom_call.1} parent=51 // pred_check
          %p483 = pneg %p158
        $region58: #{tpu_custom_call.1} parent=51 // pred_check_branch
          %485 = sbr.rel (%p483) target = $region60
        $region59: #{tpu_custom_call.1} parent=51 // pred_region
          %p486 = scmp.lt.s32.totalorder %s33, 1
          %s487 = scalar_select %p486, %s33, 1
          %p488 = scmp.lt.s32.totalorder %s34, 3
          %s489 = scalar_select %p488, %s34, 3
          %p490 = scmp.lt.s32.totalorder %s35, 0
          %s491 = scalar_select %p490, %s35, 0
          %s492 = sadd.s32 %s491, %s489
          %s493 = smul.addr %s487, 4
          %s494 = sadd.s32 %s492, %s493
          %s495 = smul.addr %s494, 8
          %s496 = scalar_lea.vmem %s3, %s495
        $region60: #{tpu_custom_call.1} parent=51 // pred_fallthru
          _
        // Predicated region
        $region61: #{tpu_custom_call.1} parent=51 // pred_check
          %p497 = pneg %p188
        $region62: #{tpu_custom_call.1} parent=51 // pred_check_branch
          %499 = sbr.rel (%p497) target = $region64
        $region63: #{tpu_custom_call.1} parent=51 // pred_region
          %p500 = scmp.lt.s32.totalorder %s33, 1
          %s501 = scalar_select %p500, %s33, 1
          %p502 = scmp.lt.s32.totalorder %s34, 3
          %s503 = scalar_select %p502, %s34, 3
          %p504 = scmp.lt.s32.totalorder %s35, 0
          %s505 = scalar_select %p504, %s35, 0
          %s506 = sadd.s32 %s505, %s503
          %s507 = smul.addr %s501, 4
          %s508 = sadd.s32 %s506, %s507
          %s509 = smul.addr %s508, 8
          %s510 = scalar_lea.vmem %s4, %s509
        $region64: #{tpu_custom_call.1} parent=51 // pred_fallthru
          _
      $region52: #{tpu_custom_call.1} parent=5 // pred_fallthru
        _
    $region6: #{tpu_custom_call.1} parent=1 // loop_footer
      %s24 = sadd.s32 1, %s20
    $region7: #{tpu_custom_call.1} parent=1 // loop_footer_branch
      %19 = sbr.rel target = $region3
    $region8: #{tpu_custom_call.1} parent=1 // loop_exit
      _
    %511 = vsyncpa [#allocation3], 1
    %s512 = scalar_lea.sflag [#allocation3], 1
    %513 = vsyncpa %s512, 1
    %514 = vsyncpa [#allocation6], 1
    %s515 = scalar_lea.sflag [#allocation6], 1
    %516 = vsyncpa %s515, 1
    %517 = vsyncpa [#allocation4], 1
    %s518 = scalar_lea.sflag [#allocation4], 1
    %519 = vsyncpa %s518, 1

</llo_original>
